<compile_context>
chip_gen: v6e
topology: v6e:2x2x1
jax: 0.10.0
libtpu: 0.0.40
codegen_flags: <defaults>
</compile_context>

<pallas_src>
import jax
import jax.numpy as jnp
from jax.experimental import pallas as pl
from jax.experimental.pallas import tpu as pltpu


# ------------------------------------------------------------------
# Fused kernel: one batch element per grid step.
#   adjT_ref : (N, M)      adj transposed (so aggregation is plain A @ B)
#   x_ref    : (T, M, C)   activations for batch b (leading dim squeezed)
#   w_ref    : (C, D2)     Linear weight, stored (in, out)
#   b_ref    : (1, D2)     Linear bias
#   o_ref    : (T*N, D2)   output slab (lane-dense when D2 % 128 == 0)
# ------------------------------------------------------------------
def _mf_gnn_kernel(adjT_ref, x_ref, w_ref, b_ref, o_ref):
    T, M, C = x_ref.shape
    N = adjT_ref.shape[0]

    # bf16 MXU inputs, f32 accumulation (v6e/v7x native bf16 MXU; v5e MXU also
    # accepts bf16).  Broadcast of adjT is hoisted (done once per grid step).
    x_bf = x_ref[...].astype(jnp.bfloat16)                          # (T, M, C)
    adjT_bf = jnp.broadcast_to(
        adjT_ref[...].astype(jnp.bfloat16)[None], (T, N, M))        # (T, N, M)
    w_bf = w_ref[...].astype(jnp.bfloat16)                          # (C, D2)

    # Node aggregation, batched over T inside a single grid step:
    #   y[t] = adj^T @ x[t]   ->  (T, N, C), f32 accumulation.
    y = jnp.einsum('tnm,tmc->tnc', adjT_bf, x_bf,
                   preferred_element_type=jnp.float32)

    # Channel projection with M-rows = T*N (fills the MXU row dimension).
    # (T, N, C) -> (T*N, C) is a layout-preserving leading-dim collapse
    # (requires N % 8 == 0, asserted in the wrapper).
    y_rows = y.reshape(T * N, C).astype(jnp.bfloat16)
    h = jnp.dot(y_rows, w_bf, preferred_element_type=jnp.float32)   # (T*N, D2)

    # Bias + ReLU in f32, lane-dense store of the full (T*N, D2) tile.
    o_ref[...] = jnp.maximum(h + b_ref[...], 0.0)


# ------------------------------------------------------------------
# Wrapper: mf_based_gnn.forward(x, adj)
# ------------------------------------------------------------------
def mf_based_gnn_forward(x, adj, fc_w, fc_b):
    """x: (B, T, M, C) f32, adj: (M, N) f32, fc_w: (C, D2), fc_b: (1, D2).

    Returns relu(einsum('mn,btmc->btnc', adj, x) @ fc_w + fc_b): (B, T, N, D2).
    """
    B, T, M, C = x.shape
    M_a, N = adj.shape
    assert M_a == M, "adjacency first dim must match the node dim of x"
    D2 = fc_w.shape[1]
    assert fc_w.shape[0] == C and fc_b.shape == (1, D2)
    # Needed for the zero-cost (T, N, C) -> (T*N, C) collapse in the kernel.
    assert N % 8 == 0, "node (output) dim must be a multiple of 8"

    # Tiny one-time transpose of the (M, N) adjacency so the kernel runs the
    # aggregation as a standard (non-transposed) batched matmul.  This is NOT
    # a full-activation transpose (those were removed).
    adj_t = adj.T                                                    # (N, M)

    out = pl.pallas_call(
        _mf_gnn_kernel,
        out_shape=jax.ShapeDtypeStruct((B, T * N, D2), jnp.float32),
        grid=(B,),
        in_specs=[
            pl.BlockSpec((N, M), lambda i: (0, 0)),                  # adj^T (shared)
            pl.BlockSpec((None, T, M, C), lambda i: (i, 0, 0, 0)),   # x[b], lead squeezed
            pl.BlockSpec((C, D2), lambda i: (0, 0)),                 # W (shared)
            pl.BlockSpec((1, D2), lambda i: (0, 0)),                 # bias (shared)
        ],
        out_specs=pl.BlockSpec((None, T * N, D2), lambda i: (i, 0, 0)),
        compiler_params=pltpu.CompilerParams(
            dimension_semantics=("parallel",)),                      # >=2 for v7x 2 TCs
    )(adj_t, x, fc_w, fc_b)

    # Free reshape of the contiguous slab back to the module's output layout.
    return out.reshape(B, T, N, D2)
    # TODO(synk): for very large N (thousands of nodes) tile the node dim with an
    # extra grid axis and set vmem_limit_bytes; not needed at these sizes.


if __name__ == "__main__":
    # Small shapes consistent with the module: batch=2, seq=8, nodes=16,
    # d_model1=32 in-channels, d_model2=128 out-channels (multiple of 128 so
    # the output stores are lane-dense).
    B, T, M, C = 2, 8, 16, 32
    N = M
    D2 = 128

    key = jax.random.PRNGKey(0)
    kx, ka, kw, kb = jax.random.split(key, 4)
    x = jax.random.normal(kx, (B, T, M, C), jnp.float32)
    adj = jax.random.normal(ka, (M, N), jnp.float32) * 0.1
    fc_w = jax.random.normal(kw, (C, D2), jnp.float32) * 0.1   # == torch weight.T
    fc_b = jax.random.normal(kb, (1, D2), jnp.float32) * 0.1

    out = mf_based_gnn_forward(x, adj, fc_w, fc_b)
    out = jax.block_until_ready(out)
    assert out.shape == (B, T, N, D2) and out.dtype == jnp.float32

    # Pure-JAX reference (f32); kernel uses bf16 MXU inputs with f32 accum,
    # so compare with a generous but meaningful tolerance.
    ref = jnp.einsum('mn,btmc->btnc', adj, x)
    ref = jnp.maximum(jnp.einsum('btnc,cd->btnd', ref, fc_w) + fc_b[0], 0.0)
    assert bool(jnp.allclose(out, ref, rtol=2e-2, atol=2e-2)), (
        "kernel mismatch vs reference: max abs err = "
        f"{float(jnp.max(jnp.abs(out - ref)))}")

    print("KERNEL_OK")
</pallas_src>

<mosaic_0001>
module attributes {stable_mosaic.version = 11 : i64} {
  func.func @_mf_gnn_kernel(%arg0: i32, %arg1: memref<16x16xf32, #tpu.memory_space<vmem>>, %arg2: memref<1x8x16x32xf32, #tpu.memory_space<vmem>>, %arg3: memref<32x128xf32, #tpu.memory_space<vmem>>, %arg4: memref<1x128xf32, #tpu.memory_space<vmem>>, %arg5: memref<1x128x128xf32, #tpu.memory_space<vmem>>) attributes {dimension_semantics = [#tpu.dimension_semantics<parallel>], iteration_bounds = array<i64: 2>, scalar_prefetch = 0 : i64, scratch_operands = 0 : i64, tpu.core_type = #tpu.core_type<tc>, window_params = [{pipeline_mode = #tpu.pipeline_mode<synchronous>, transform_indices = @transform_0, window_bounds = array<i64: 16, 16>}, {transform_indices = @transform_1, window_bounds = array<i64: 1, 8, 16, 32>}, {pipeline_mode = #tpu.pipeline_mode<synchronous>, transform_indices = @transform_2, window_bounds = array<i64: 32, 128>}, {pipeline_mode = #tpu.pipeline_mode<synchronous>, transform_indices = @transform_3, window_bounds = array<i64: 1, 128>}, {transform_indices = @transform_4, window_bounds = array<i64: 1, 128, 128>}]} {
    %c0 = arith.constant 0 : index
    %c0_0 = arith.constant 0 : index
    %c0_1 = arith.constant 0 : index
    %c0_2 = arith.constant 0 : index
    %0 = vector.load %arg2[%c0, %c0_0, %c0_1, %c0_2] : memref<1x8x16x32xf32, #tpu.memory_space<vmem>>, vector<1x8x16x32xf32>
    %1 = vector.shape_cast %0 : vector<1x8x16x32xf32> to vector<8x16x32xf32>
    %2 = arith.truncf %1 : vector<8x16x32xf32> to vector<8x16x32xbf16>
    %c0_3 = arith.constant 0 : index
    %c0_4 = arith.constant 0 : index
    %3 = vector.load %arg1[%c0_3, %c0_4] : memref<16x16xf32, #tpu.memory_space<vmem>>, vector<16x16xf32>
    %4 = arith.truncf %3 : vector<16x16xf32> to vector<16x16xbf16>
    %5 = vector.shape_cast %4 : vector<16x16xbf16> to vector<1x16x16xbf16>
    %6 = vector.shape_cast %5 : vector<1x16x16xbf16> to vector<1x16x16xbf16>
    %7 = vector.broadcast %6 : vector<1x16x16xbf16> to vector<8x16x16xbf16>
    %c0_5 = arith.constant 0 : index
    %c0_6 = arith.constant 0 : index
    %8 = vector.load %arg3[%c0_5, %c0_6] : memref<32x128xf32, #tpu.memory_space<vmem>>, vector<32x128xf32>
    %9 = arith.truncf %8 : vector<32x128xf32> to vector<32x128xbf16>
    "tpu.trace_start"() <{level = 10 : i32, message = "tnm,tmc->tnc"}> : () -> ()
    %cst = arith.constant dense<0.000000e+00> : vector<8x16x32xf32>
    %10 = tpu.matmul %7, %2, %cst {dimension_numbers = #tpu.dot_dimension_numbers<[2], [1], [1], [2], [0, 0, 0, 1, 1, 2], [0], [0]>} : vector<8x16x16xbf16>, vector<8x16x32xbf16>, vector<8x16x32xf32> -> vector<8x16x32xf32>
    "tpu.trace_stop"() : () -> ()
    %11 = vector.shape_cast %10 : vector<8x16x32xf32> to vector<128x32xf32>
    %12 = arith.truncf %11 : vector<128x32xf32> to vector<128x32xbf16>
    %cst_7 = arith.constant dense<0.000000e+00> : vector<128x128xf32>
    %13 = tpu.matmul %12, %9, %cst_7 {dimension_numbers = #tpu.dot_dimension_numbers<[1], [0], [0], [1], [0, 0, 1, 1], [], []>} : vector<128x32xbf16>, vector<32x128xbf16>, vector<128x128xf32> -> vector<128x128xf32>
    %c0_8 = arith.constant 0 : index
    %c0_9 = arith.constant 0 : index
    %14 = vector.load %arg4[%c0_8, %c0_9] : memref<1x128xf32, #tpu.memory_space<vmem>>, vector<1x128xf32>
    %15 = vector.broadcast %14 : vector<1x128xf32> to vector<128x128xf32>
    %16 = arith.addf %13, %15 : vector<128x128xf32>
    %cst_10 = arith.constant 0.000000e+00 : f32
    %17 = vector.broadcast %cst_10 : f32 to vector<128x128xf32>
    %18 = arith.maximumf %16, %17 : vector<128x128xf32>
    %c0_11 = arith.constant 0 : index
    %c0_12 = arith.constant 0 : index
    %c0_13 = arith.constant 0 : index
    %19 = vector.load %arg5[%c0_11, %c0_12, %c0_13] : memref<1x128x128xf32, #tpu.memory_space<vmem>>, vector<1x128x128xf32>
    %20 = vector.shape_cast %19 : vector<1x128x128xf32> to vector<128x128xf32>
    %21 = vector.shape_cast %18 : vector<128x128xf32> to vector<1x128x128xf32>
    tpu.vector_store %arg5[%c0_11, %c0_12, %c0_13], %21 {strides = array<i32>} : memref<1x128x128xf32, #tpu.memory_space<vmem>>, vector<1x128x128xf32>,
    return
  }
  func.func @transform_0(%arg0: i32) -> (i32, i32) {
    %c0_i32 = arith.constant 0 : i32
    %c0_i32_0 = arith.constant 0 : i32
    %c0_i32_1 = arith.constant 0 : i32
    return %c0_i32, %c0_i32_0 : i32, i32
  }
  func.func @transform_1(%arg0: i32) -> (i32, i32, i32, i32) {
    %c0_i32 = arith.constant 0 : i32
    %c0_i32_0 = arith.constant 0 : i32
    %c0_i32_1 = arith.constant 0 : i32
    %c0_i32_2 = arith.constant 0 : i32
    return %arg0, %c0_i32, %c0_i32_0, %c0_i32_1 : i32, i32, i32, i32
  }
  func.func @transform_2(%arg0: i32) -> (i32, i32) {
    %c0_i32 = arith.constant 0 : i32
    %c0_i32_0 = arith.constant 0 : i32
    %c0_i32_1 = arith.constant 0 : i32
    return %c0_i32, %c0_i32_0 : i32, i32
  }
  func.func @transform_3(%arg0: i32) -> (i32, i32) {
    %c0_i32 = arith.constant 0 : i32
    %c0_i32_0 = arith.constant 0 : i32
    %c0_i32_1 = arith.constant 0 : i32
    return %c0_i32, %c0_i32_0 : i32, i32
  }
  func.func @transform_4(%arg0: i32) -> (i32, i32, i32) {
    %c0_i32 = arith.constant 0 : i32
    %c0_i32_0 = arith.constant 0 : i32
    %c0_i32_1 = arith.constant 0 : i32
    return %arg0, %c0_i32, %c0_i32_0 : i32, i32, i32
  }
}

</mosaic_0001>

<llo_original>
// kernel: tpu_custom_call.1
$region0: #{tpu_custom_call.1}
  #allocation0 [shape = 'u32[]', space=smem, size = 0x4, offset = 0x4, fixed_abs, tag = 'smem constant byte address 0x4 - core index']
  #allocation1 [shape = 'u32[144,128]{1,0:T(1,128)}', space=vmem, size = 0x12000, scoped, tag = 'internal scratch']
  %s0 = inlined_call_operand.hbm [shape: f32[16,16], index: 0, kind: input, shape index: {}]
  %s1 = inlined_call_operand.hbm [shape: f32[2,8,16,32], index: 1, kind: input, shape index: {}]
  %s2 = inlined_call_operand.hbm [shape: f32[32,128], index: 2, kind: input, shape index: {}]
  %s3 = inlined_call_operand.vmem [shape: f32[1,128], index: 3, kind: input, shape index: {}]
  %s4 = inlined_call_operand.hbm [shape: f32[2,128,128], index: 4, kind: output, shape index: {}]
  %s5 = sld [smem:[#allocation0]]
  $region61: #{tpu_custom_call.1} parent=0
    _
  %s7 = ssub.s32 1, %s5
  %s8 = scalar_select 0, %s7, %s5
  $region1: #{tpu_custom_call.1} parent=0
    #allocation2 [shape = 'u8[8192]{0}', space=vmem, size = 0x2000, scoped, tag = 'input window, operand 0, single buffered']
    #allocation3 [shape = 's32[2]{0}', space=sflag, size = 0x8, scoped, tag = 'scoped memory for tpu_custom_call.1']
    #allocation4 [shape = 's32[2]{0}', space=sflag, size = 0x8, scoped, tag = 'scoped memory for tpu_custom_call.1']
    #allocation5 [shape = 'u8[131072]{0}', space=vmem, size = 0x20000, scoped, tag = 'input window, operand 1']
    #allocation6 [shape = 's32[2]{0}', space=sflag, size = 0x8, scoped, tag = 'scoped memory for tpu_custom_call.1']
    #allocation7 [shape = 'u8[16384]{0}', space=vmem, size = 0x4000, scoped, tag = 'input window, operand 2, single buffered']
    #allocation8 [shape = 'u8[131072]{0}', space=vmem, size = 0x20000, scoped, tag = 'output window, operand 0']
    %9 = vsyncpa [#allocation3], 0
    %10 = vsyncpa [#allocation6], 0
    %s11 = scalar_lea.sflag [#allocation6], 1
    %12 = vsyncpa %s11, 0
    %13 = vsyncpa [#allocation4], 0
    %s14 = scalar_lea.sflag [#allocation4], 1
    %15 = vsyncpa %s14, 0
    loop: start=0, step=1, limit=4
    $region2: #{tpu_custom_call.1} parent=1 // loop_pre_header
      _
    $region3: #{tpu_custom_call.1} parent=1 // loop_header
      %s17 = sphi 0, %s21
      %p18 = scmp.ge.s32.totalorder %s17, 4
      %s25 = sphi 0, %s25
      %s27 = sphi 0, %s25
      %s28 = sphi 0, %s27
      %s42 = sphi 0, %s28
      %s48 = sphi 0, %s50
      %s51 = sphi 0, %s48
      %s52 = sphi 0, %s51
      %s68 = sphi 0, %s52
      %s72 = sphi 0, %s72
      %s74 = sphi 0, %s72
      %s75 = sphi 0, %s74
      %s89 = sphi 0, %s75
      %s93 = sphi 0, %s93
      %s95 = sphi 0, %s93
      %s96 = sphi 0, %s95
      %s110 = sphi 0, %s96
      %s116 = sphi 0, %s118
      %s119 = sphi 0, %s116
      %s120 = sphi 0, %s119
      %s136 = sphi 0, %s120
    $region4: #{tpu_custom_call.1} parent=1 // loop_header_branch
      %20 = sbr.rel (%p18) target = $region8
    $region5: #{tpu_custom_call.1} parent=1 // loop_body
      %s22 = ssub.s32 %s17, 1
      %s23 = ssub.s32 %s17, 2
      %s24 = sadd.s32 %s17, 1
      %s26 = sadd.s32 %s25, 1
      %p29 = scmp.eq.s32.totalorder %s17, 1
      %p30 = scmp.ne.s32.totalorder %s25, %s27
      %p31 = scmp.eq.s32.totalorder %s17, 0
      %p32 = por %p30, %p31
      %p33 = scmp.ne.s32.totalorder %s25, %s27
      %p34 = scmp.eq.s32.totalorder %s22, 1
      %p35 = por %p33, %p34
      %p36 = scmp.ne.s32.totalorder %s27, %s28
      %p37 = scmp.eq.s32.totalorder %s22, 0
      %p38 = por %p36, %p37
      %p39 = scmp.ne.s32.totalorder %s27, %s28
      %p40 = scmp.eq.s32.totalorder %s23, 1
      %p41 = por %p39, %p40
      %p43 = scmp.ne.s32.totalorder %s28, %s42
      %p44 = scmp.eq.s32.totalorder %s23, 0
      %p45 = por %p43, %p44
      %s46 = ssub.s32 %s17, %s24
      %p47 = scmp.eq.s32.totalorder %s46, 0
      %s49 = sadd.s32 %s48, 1
      %s50 = scalar_select %p47, %s48, %s49
      %p53 = pneg %p47
      %p54 = scmp.eq.s32.totalorder %s17, 1
      %p55 = por %p53, %p54
      %p56 = scmp.ne.s32.totalorder %s48, %s51
      %p57 = scmp.eq.s32.totalorder %s17, 0
      %p58 = por %p56, %p57
      %p59 = scmp.ne.s32.totalorder %s48, %s51
      %p60 = scmp.eq.s32.totalorder %s22, 1
      %p61 = por %p59, %p60
      %p62 = scmp.ne.s32.totalorder %s51, %s52
      %p63 = scmp.eq.s32.totalorder %s22, 0
      %p64 = por %p62, %p63
      %p65 = scmp.ne.s32.totalorder %s51, %s52
      %p66 = scmp.eq.s32.totalorder %s23, 1
      %p67 = por %p65, %p66
      %p69 = scmp.ne.s32.totalorder %s52, %s68
      %p70 = scmp.eq.s32.totalorder %s23, 0
      %p71 = por %p69, %p70
      %s73 = sadd.s32 %s72, 1
      %p76 = scmp.eq.s32.totalorder %s17, 1
      %p77 = scmp.ne.s32.totalorder %s72, %s74
      %p78 = scmp.eq.s32.totalorder %s17, 0
      %p79 = por %p77, %p78
      %p80 = scmp.ne.s32.totalorder %s72, %s74
      %p81 = scmp.eq.s32.totalorder %s22, 1
      %p82 = por %p80, %p81
      %p83 = scmp.ne.s32.totalorder %s74, %s75
      %p84 = scmp.eq.s32.totalorder %s22, 0
      %p85 = por %p83, %p84
      %p86 = scmp.ne.s32.totalorder %s74, %s75
      %p87 = scmp.eq.s32.totalorder %s23, 1
      %p88 = por %p86, %p87
      %p90 = scmp.ne.s32.totalorder %s75, %s89
      %p91 = scmp.eq.s32.totalorder %s23, 0
      %p92 = por %p90, %p91
      %s94 = sadd.s32 %s93, 1
      %p97 = scmp.eq.s32.totalorder %s17, 1
      %p98 = scmp.ne.s32.totalorder %s93, %s95
      %p99 = scmp.eq.s32.totalorder %s17, 0
      %p100 = por %p98, %p99
      %p101 = scmp.ne.s32.totalorder %s93, %s95
      %p102 = scmp.eq.s32.totalorder %s22, 1
      %p103 = por %p101, %p102
      %p104 = scmp.ne.s32.totalorder %s95, %s96
      %p105 = scmp.eq.s32.totalorder %s22, 0
      %p106 = por %p104, %p105
      %p107 = scmp.ne.s32.totalorder %s95, %s96
      %p108 = scmp.eq.s32.totalorder %s23, 1
      %p109 = por %p107, %p108
      %p111 = scmp.ne.s32.totalorder %s96, %s110
      %p112 = scmp.eq.s32.totalorder %s23, 0
      %p113 = por %p111, %p112
      %s114 = ssub.s32 %s17, %s24
      %p115 = scmp.eq.s32.totalorder %s114, 0
      %s117 = sadd.s32 %s116, 1
      %s118 = scalar_select %p115, %s116, %s117
      %p121 = pneg %p115
      %p122 = scmp.eq.s32.totalorder %s17, 1
      %p123 = por %p121, %p122
      %p124 = scmp.ne.s32.totalorder %s116, %s119
      %p125 = scmp.eq.s32.totalorder %s17, 0
      %p126 = por %p124, %p125
      %p127 = scmp.ne.s32.totalorder %s116, %s119
      %p128 = scmp.eq.s32.totalorder %s22, 1
      %p129 = por %p127, %p128
      %p130 = scmp.ne.s32.totalorder %s119, %s120
      %p131 = scmp.eq.s32.totalorder %s22, 0
      %p132 = por %p130, %p131
      %p133 = scmp.ne.s32.totalorder %s119, %s120
      %p134 = scmp.eq.s32.totalorder %s23, 1
      %p135 = por %p133, %p134
      %p137 = scmp.ne.s32.totalorder %s120, %s136
      %p138 = scmp.eq.s32.totalorder %s23, 0
      %p139 = por %p137, %p138
      %p140 = scmp.le.s32.totalorder 1, %s17
      %p141 = scmp.lt.s32.totalorder %s17, 3
      %p142 = pnand %p140, %p141
      %p143 = pneg %p142
      // Predicated region
      $region9: #{tpu_custom_call.1} parent=5 // pred_check
        _
      $region10: #{tpu_custom_call.1} parent=5 // pred_check_branch
        %145 = sbr.rel (%p142) target = $region12
      $region11: #{tpu_custom_call.1} parent=5 // pred_region
        %s146 = ssub.s32 %s17, 1
        // Predicated region
        $region13: #{tpu_custom_call.1} parent=11 // pred_check
          %p147 = pneg %p38
        $region14: #{tpu_custom_call.1} parent=11 // pred_check_branch
          %149 = sbr.rel (%p147) target = $region16
        $region15: #{tpu_custom_call.1} parent=11 // pred_region
          %s151 = ssub.s32 256, 256
          %152 = vsyncadd [#allocation3], %s151
          %s153 = sshll.u32 [#allocation2], 4
          %s154 = int_to_ptr.vmem [resolvable:$true] %s153
          %159 = dma.hbm_to_vmem [thread:$0]  %s0, 256, %s154, [#allocation3], 128, 128, 8
        $region16: #{tpu_custom_call.1} parent=11 // pred_fallthru
          _
        // Predicated region
        $region17: #{tpu_custom_call.1} parent=11 // pred_check
          %p160 = pneg %p85
        $region18: #{tpu_custom_call.1} parent=11 // pred_check_branch
          %162 = sbr.rel (%p160) target = $region20
        $region19: #{tpu_custom_call.1} parent=11 // pred_region
          %s164 = ssub.s32 512, 512
          %165 = vsyncadd [#allocation6], %s164
          %s166 = sshll.u32 [#allocation7], 4
          %s167 = int_to_ptr.vmem [resolvable:$true] %s166
          %172 = dma.hbm_to_vmem [thread:$0]  %s2, 512, %s167, [#allocation6], 128, 128, 8
        $region20: #{tpu_custom_call.1} parent=11 // pred_fallthru
          _
        // Predicated region
        $region21: #{tpu_custom_call.1} parent=11 // pred_check
          %p173 = pneg %p106
        $region22: #{tpu_custom_call.1} parent=11 // pred_check_branch
          %175 = sbr.rel (%p173) target = $region24
        $region23: #{tpu_custom_call.1} parent=11 // pred_region
          _
        $region24: #{tpu_custom_call.1} parent=11 // pred_fallthru
          _
      $region12: #{tpu_custom_call.1} parent=5 // pred_fallthru
        _
      %p176 = scmp.lt.s32.totalorder %s17, 2
      // Predicated region
      $region25: #{tpu_custom_call.1} parent=5 // pred_check
        %p177 = pneg %p176
      $region26: #{tpu_custom_call.1} parent=5 // pred_check_branch
        %179 = sbr.rel (%p177) target = $region28
      $region27: #{tpu_custom_call.1} parent=5 // pred_region
        // Predicated region
        $region29: #{tpu_custom_call.1} parent=27 // pred_check
          %p180 = pneg %p58
        $region30: #{tpu_custom_call.1} parent=27 // pred_check_branch
          %182 = sbr.rel (%p180) target = $region32
        $region31: #{tpu_custom_call.1} parent=27 // pred_region
          %s183 = sand.u32 %s17, 1
          %s184 = scalar_lea.sflag [#allocation6], %s183
          %s185 = sand.u32 %s48, 1
          %s186 = smul.addr %s185, 128
          %s187 = scalar_lea.vmem [#allocation5], %s186
          %s189 = ssub.s32 2048, 2048
          %190 = vsyncadd %s184, %s189
          %s191 = smul.addr %s17, 16
          %s192 = smul.addr %s191, 128
          %s193 = scalar_lea.hbm %s1, %s192
          %s194 = sshll.u32 %s187, 4
          %s195 = int_to_ptr.vmem [resolvable:$true] %s194
          %200 = dma.hbm_to_vmem [thread:$0]  %s193, 2048, %s195, %s184, 128, 128, 8
        $region32: #{tpu_custom_call.1} parent=27 // pred_fallthru
          _
      $region28: #{tpu_custom_call.1} parent=5 // pred_fallthru
        _
      %p201 = scmp.le.s32.totalorder 1, %s17
      %p202 = scmp.lt.s32.totalorder %s17, 3
      %p203 = pnand %p201, %p202
      %p204 = pneg %p203
      // Predicated region
      $region33: #{tpu_custom_call.1} parent=5 // pred_check
        _
      $region34: #{tpu_custom_call.1} parent=5 // pred_check_branch
        %206 = sbr.rel (%p203) target = $region36
      $region35: #{tpu_custom_call.1} parent=5 // pred_region
        %s207 = ssub.s32 %s17, 1
        // Predicated region
        $region37: #{tpu_custom_call.1} parent=35 // pred_check
          %p208 = pneg %p38
        $region38: #{tpu_custom_call.1} parent=35 // pred_check_branch
          %210 = sbr.rel (%p208) target = $region40
        $region39: #{tpu_custom_call.1} parent=35 // pred_region
          %211 = dma.done [#allocation3], 256
        $region40: #{tpu_custom_call.1} parent=35 // pred_fallthru
          _
        %s212 = sand.u32 %s22, 1
        %s213 = scalar_lea.sflag [#allocation6], %s212
        %s214 = sand.u32 %s51, 1
        %s215 = smul.addr %s214, 128
        %s216 = scalar_lea.vmem [#allocation5], %s215
        // Predicated region
        $region41: #{tpu_custom_call.1} parent=35 // pred_check
          %p217 = pneg %p64
        $region42: #{tpu_custom_call.1} parent=35 // pred_check_branch
          %219 = sbr.rel (%p217) target = $region44
        $region43: #{tpu_custom_call.1} parent=35 // pred_region
          %220 = dma.done %s213, 2048
        $region44: #{tpu_custom_call.1} parent=35 // pred_fallthru
          _
        // Predicated region
        $region45: #{tpu_custom_call.1} parent=35 // pred_check
          %p221 = pneg %p85
        $region46: #{tpu_custom_call.1} parent=35 // pred_check_branch
          %223 = sbr.rel (%p221) target = $region48
        $region47: #{tpu_custom_call.1} parent=35 // pred_region
          %224 = dma.done [#allocation6], 512
        $region48: #{tpu_custom_call.1} parent=35 // pred_fallthru
          _
        %p225 = pneg %p38
        %p226 = pneg %p35
        %s227 = sand.u32 %s22, 1
        %s228 = scalar_lea.sflag [#allocation6], %s227
        %s229 = sand.u32 %s51, 1
        %s230 = smul.addr %s229, 128
        %s231 = scalar_lea.vmem [#allocation5], %s230
        %p232 = pneg %p64
        %p233 = pneg %p61
        %p234 = pneg %p85
        %p235 = pneg %p82
        %p236 = pneg %p106
        %p237 = pneg %p103
        %p238 = pneg %p132
        %p239 = pneg %p129
        %s240 = sand.u32 %s119, 1
        %s241 = scalar_lea.sflag [#allocation4], %s240
        %s242 = sand.u32 %s119, 1
        %s243 = smul.addr %s242, 128
        %s244 = scalar_lea.vmem [#allocation8], %s243
        %v246 = vld [vmem:[%s216] sm:$0xff]
        %v247 = vld [vmem:[%s216 + $0x8] sm:$0xff]
        %v248 = vld [vmem:[%s216 + $0x10] sm:$0xff]
        %v249 = vld [vmem:[%s216 + $0x18] sm:$0xff]
        %v250 = vld [vmem:[%s216 + $0x20] sm:$0xff]
        %v251 = vld [vmem:[%s216 + $0x28] sm:$0xff]
        %v252 = vld [vmem:[%s216 + $0x30] sm:$0xff]
        %v253 = vld [vmem:[%s216 + $0x38] sm:$0xff]
        %v254 = vld [vmem:[%s216 + $0x40] sm:$0xff]
        %v255 = vld [vmem:[%s216 + $0x48] sm:$0xff]
        %v256 = vld [vmem:[%s216 + $0x50] sm:$0xff]
        %v257 = vld [vmem:[%s216 + $0x58] sm:$0xff]
        %v258 = vld [vmem:[%s216 + $0x60] sm:$0xff]
        %v259 = vld [vmem:[%s216 + $0x68] sm:$0xff]
        %v260 = vld [vmem:[%s216 + $0x70] sm:$0xff]
        %v261 = vld [vmem:[%s216 + $0x78] sm:$0xff]
        %v262 = vpack.c.bf16 %v247, %v246
        %v263 = vpack.c.bf16 %v249, %v248
        %v264 = vpack.c.bf16 %v251, %v250
        %v265 = vpack.c.bf16 %v253, %v252
        %v266 = vpack.c.bf16 %v255, %v254
        %v267 = vpack.c.bf16 %v257, %v256
        %v268 = vpack.c.bf16 %v259, %v258
        %v269 = vpack.c.bf16 %v261, %v260
        %v270 = vld [vmem:[#allocation2] sm:$0xff]
        %v271 = vld [vmem:[#allocation2 + $0x8] sm:$0xff]
        %v272 = vpack.c.bf16 %v271, %v270
        %v273 = vld [vmem:[#allocation7] sm:$0xff]
        %v274 = vld [vmem:[#allocation7 + $0x8] sm:$0xff]
        %v275 = vld [vmem:[#allocation7 + $0x10] sm:$0xff]
        %v276 = vld [vmem:[#allocation7 + $0x18] sm:$0xff]
        %v277 = vpack.c.bf16 %v274, %v273
        %v278 = vpack.c.bf16 %v276, %v275
        %vm279 = vcmask 130048
        %v281 = vsel %vm279, %v272, 0
        %283 = vmatprep.subr.bf16.mxu0 0
        %284 = vmatpush1.bf16.msra.mxu0 0
        %285 = vmatprep.subr.bf16.mxu0 0
        %286 = vmatpush1.bf16.msra.mxu0 0
        %287 = vmatprep.subr.bf16.mxu0 0
        %288 = vmatpush1.bf16.msra.mxu0 0
        %289 = vmatprep.subr.bf16.mxu0 0
        %290 = vmatpush1.bf16.msra.mxu0 0
        %291 = vmatprep.subr.bf16.mxu0 0
        %292 = vmatpush1.bf16.msra.mxu0 0
        %293 = vmatprep.subr.bf16.mxu0 0
        %294 = vmatpush1.bf16.msra.mxu0 0
        %295 = vmatprep.subr.bf16.mxu0 0
        %296 = vmatpush1.bf16.msra.mxu0 0
        %297 = vmatprep.subr.bf16.mxu0 0
        %298 = vmatpush1.bf16.msra.mxu0 %v262
        %299 = vmatprep.subr.bf16.mxu0 0
        %300 = vmatpush2.bf16.msra.mxu0 0
        %301 = vmatprep.subr.bf16.mxu0 0
        %302 = vmatpush2.bf16.msra.mxu0 0
        %303 = vmatprep.subr.bf16.mxu0 0
        %304 = vmatpush2.bf16.msra.mxu0 0
        %305 = vmatprep.subr.bf16.mxu0 0
        %306 = vmatpush2.bf16.msra.mxu0 0
        %307 = vmatprep.subr.bf16.mxu0 0
        %308 = vmatpush2.bf16.msra.mxu0 0
        %309 = vmatprep.subr.bf16.mxu0 0
        %310 = vmatpush2.bf16.msra.mxu0 0
        %311 = vmatprep.subr.bf16.mxu0 0
        %312 = vmatpush2.bf16.msra.mxu0 0
        %313 = vmatprep.subr.bf16.mxu0 0
        %314 = vmatpush2.bf16.msra.mxu0 0
        %315 = vmatprep.mubr.bf16.mxu0 0
        %316 = vmatmul.mubr.bf16.gmra.mxu0 %v281
        %v317 = vpop.f32.mrf.mxu0
        %v318 = vadd.f32 0.0, %v317
        %v319 = vpop.f32.mrf.mxu0
        %v320 = vpop.f32.mrf.mxu0
        %v321 = vadd.f32 0.0, %v320
        %v322 = vpop.f32.mrf.mxu0
        %323 = vdwg.mxu0
        %324 = vmatprep.subr.bf16.mxu0 0
        %325 = vmatpush1.bf16.msra.mxu0 0
        %326 = vmatprep.subr.bf16.mxu0 0
        %327 = vmatpush1.bf16.msra.mxu0 0
        %328 = vmatprep.subr.bf16.mxu0 0
        %329 = vmatpush1.bf16.msra.mxu0 0
        %330 = vmatprep.subr.bf16.mxu0 0
        %331 = vmatpush1.bf16.msra.mxu0 0
        %332 = vmatprep.subr.bf16.mxu0 0
        %333 = vmatpush1.bf16.msra.mxu0 0
        %334 = vmatprep.subr.bf16.mxu0 0
        %335 = vmatpush1.bf16.msra.mxu0 0
        %336 = vmatprep.subr.bf16.mxu0 0
        %337 = vmatpush1.bf16.msra.mxu0 0
        %338 = vmatprep.subr.bf16.mxu0 0
        %339 = vmatpush1.bf16.msra.mxu0 %v263
        %340 = vmatprep.subr.bf16.mxu0 0
        %341 = vmatpush2.bf16.msra.mxu0 0
        %342 = vmatprep.subr.bf16.mxu0 0
        %343 = vmatpush2.bf16.msra.mxu0 0
        %344 = vmatprep.subr.bf16.mxu0 0
        %345 = vmatpush2.bf16.msra.mxu0 0
        %346 = vmatprep.subr.bf16.mxu0 0
        %347 = vmatpush2.bf16.msra.mxu0 0
        %348 = vmatprep.subr.bf16.mxu0 0
        %349 = vmatpush2.bf16.msra.mxu0 0
        %350 = vmatprep.subr.bf16.mxu0 0
        %351 = vmatpush2.bf16.msra.mxu0 0
        %352 = vmatprep.subr.bf16.mxu0 0
        %353 = vmatpush2.bf16.msra.mxu0 0
        %354 = vmatprep.subr.bf16.mxu0 0
        %355 = vmatpush2.bf16.msra.mxu0 0
        %356 = vmatprep.mubr.bf16.mxu0 0
        %357 = vmatmul.mubr.bf16.gmra.mxu0 %v281
        %v358 = vpop.f32.mrf.mxu0
        %v359 = vadd.f32 0.0, %v358
        %v360 = vpop.f32.mrf.mxu0
        %v361 = vpop.f32.mrf.mxu0
        %v362 = vadd.f32 0.0, %v361
        %v363 = vpop.f32.mrf.mxu0
        %364 = vdwg.mxu0
        %365 = vmatprep.subr.bf16.mxu0 0
        %366 = vmatpush1.bf16.msra.mxu0 0
        %367 = vmatprep.subr.bf16.mxu0 0
        %368 = vmatpush1.bf16.msra.mxu0 0
        %369 = vmatprep.subr.bf16.mxu0 0
        %370 = vmatpush1.bf16.msra.mxu0 0
        %371 = vmatprep.subr.bf16.mxu0 0
        %372 = vmatpush1.bf16.msra.mxu0 0
        %373 = vmatprep.subr.bf16.mxu0 0
        %374 = vmatpush1.bf16.msra.mxu0 0
        %375 = vmatprep.subr.bf16.mxu0 0
        %376 = vmatpush1.bf16.msra.mxu0 0
        %377 = vmatprep.subr.bf16.mxu0 0
        %378 = vmatpush1.bf16.msra.mxu0 0
        %379 = vmatprep.subr.bf16.mxu0 0
        %380 = vmatpush1.bf16.msra.mxu0 %v264
        %381 = vmatprep.subr.bf16.mxu0 0
        %382 = vmatpush2.bf16.msra.mxu0 0
        %383 = vmatprep.subr.bf16.mxu0 0
        %384 = vmatpush2.bf16.msra.mxu0 0
        %385 = vmatprep.subr.bf16.mxu0 0
        %386 = vmatpush2.bf16.msra.mxu0 0
        %387 = vmatprep.subr.bf16.mxu0 0
        %388 = vmatpush2.bf16.msra.mxu0 0
        %389 = vmatprep.subr.bf16.mxu0 0
        %390 = vmatpush2.bf16.msra.mxu0 0
        %391 = vmatprep.subr.bf16.mxu0 0
        %392 = vmatpush2.bf16.msra.mxu0 0
        %393 = vmatprep.subr.bf16.mxu0 0
        %394 = vmatpush2.bf16.msra.mxu0 0
        %395 = vmatprep.subr.bf16.mxu0 0
        %396 = vmatpush2.bf16.msra.mxu0 0
        %397 = vmatprep.mubr.bf16.mxu0 0
        %398 = vmatmul.mubr.bf16.gmra.mxu0 %v281
        %v399 = vpop.f32.mrf.mxu0
        %v400 = vadd.f32 0.0, %v399
        %v401 = vpop.f32.mrf.mxu0
        %v402 = vpop.f32.mrf.mxu0
        %v403 = vadd.f32 0.0, %v402
        %v404 = vpop.f32.mrf.mxu0
        %405 = vdwg.mxu0
        %406 = vmatprep.subr.bf16.mxu0 0
        %407 = vmatpush1.bf16.msra.mxu0 0
        %408 = vmatprep.subr.bf16.mxu0 0
        %409 = vmatpush1.bf16.msra.mxu0 0
        %410 = vmatprep.subr.bf16.mxu0 0
        %411 = vmatpush1.bf16.msra.mxu0 0
        %412 = vmatprep.subr.bf16.mxu0 0
        %413 = vmatpush1.bf16.msra.mxu0 0
        %414 = vmatprep.subr.bf16.mxu0 0
        %415 = vmatpush1.bf16.msra.mxu0 0
        %416 = vmatprep.subr.bf16.mxu0 0
        %417 = vmatpush1.bf16.msra.mxu0 0
        %418 = vmatprep.subr.bf16.mxu0 0
        %419 = vmatpush1.bf16.msra.mxu0 0
        %420 = vmatprep.subr.bf16.mxu0 0
        %421 = vmatpush1.bf16.msra.mxu0 %v265
        %422 = vmatprep.subr.bf16.mxu0 0
        %423 = vmatpush2.bf16.msra.mxu0 0
        %424 = vmatprep.subr.bf16.mxu0 0
        %425 = vmatpush2.bf16.msra.mxu0 0
        %426 = vmatprep.subr.bf16.mxu0 0
        %427 = vmatpush2.bf16.msra.mxu0 0
        %428 = vmatprep.subr.bf16.mxu0 0
        %429 = vmatpush2.bf16.msra.mxu0 0
        %430 = vmatprep.subr.bf16.mxu0 0
        %431 = vmatpush2.bf16.msra.mxu0 0
        %432 = vmatprep.subr.bf16.mxu0 0
        %433 = vmatpush2.bf16.msra.mxu0 0
        %434 = vmatprep.subr.bf16.mxu0 0
        %435 = vmatpush2.bf16.msra.mxu0 0
        %436 = vmatprep.subr.bf16.mxu0 0
        %437 = vmatpush2.bf16.msra.mxu0 0
        %438 = vmatprep.mubr.bf16.mxu0 0
        %439 = vmatmul.mubr.bf16.gmra.mxu0 %v281
        %v440 = vpop.f32.mrf.mxu0
        %v441 = vadd.f32 0.0, %v440
        %v442 = vpop.f32.mrf.mxu0
        %v443 = vpop.f32.mrf.mxu0
        %v444 = vadd.f32 0.0, %v443
        %v445 = vpop.f32.mrf.mxu0
        %446 = vdwg.mxu0
        %447 = vmatprep.subr.bf16.mxu0 0
        %448 = vmatpush1.bf16.msra.mxu0 0
        %449 = vmatprep.subr.bf16.mxu0 0
        %450 = vmatpush1.bf16.msra.mxu0 0
        %451 = vmatprep.subr.bf16.mxu0 0
        %452 = vmatpush1.bf16.msra.mxu0 0
        %453 = vmatprep.subr.bf16.mxu0 0
        %454 = vmatpush1.bf16.msra.mxu0 0
        %455 = vmatprep.subr.bf16.mxu0 0
        %456 = vmatpush1.bf16.msra.mxu0 0
        %457 = vmatprep.subr.bf16.mxu0 0
        %458 = vmatpush1.bf16.msra.mxu0 0
        %459 = vmatprep.subr.bf16.mxu0 0
        %460 = vmatpush1.bf16.msra.mxu0 0
        %461 = vmatprep.subr.bf16.mxu0 0
        %462 = vmatpush1.bf16.msra.mxu0 %v266
        %463 = vmatprep.subr.bf16.mxu0 0
        %464 = vmatpush2.bf16.msra.mxu0 0
        %465 = vmatprep.subr.bf16.mxu0 0
        %466 = vmatpush2.bf16.msra.mxu0 0
        %467 = vmatprep.subr.bf16.mxu0 0
        %468 = vmatpush2.bf16.msra.mxu0 0
        %469 = vmatprep.subr.bf16.mxu0 0
        %470 = vmatpush2.bf16.msra.mxu0 0
        %471 = vmatprep.subr.bf16.mxu0 0
        %472 = vmatpush2.bf16.msra.mxu0 0
        %473 = vmatprep.subr.bf16.mxu0 0
        %474 = vmatpush2.bf16.msra.mxu0 0
        %475 = vmatprep.subr.bf16.mxu0 0
        %476 = vmatpush2.bf16.msra.mxu0 0
        %477 = vmatprep.subr.bf16.mxu0 0
        %478 = vmatpush2.bf16.msra.mxu0 0
        %479 = vmatprep.mubr.bf16.mxu0 0
        %480 = vmatmul.mubr.bf16.gmra.mxu0 %v281
        %v481 = vpop.f32.mrf.mxu0
        %v482 = vadd.f32 0.0, %v481
        %v483 = vpop.f32.mrf.mxu0
        %v484 = vpop.f32.mrf.mxu0
        %v485 = vadd.f32 0.0, %v484
        %v486 = vpop.f32.mrf.mxu0
        %487 = vdwg.mxu0
        %488 = vmatprep.subr.bf16.mxu0 0
        %489 = vmatpush1.bf16.msra.mxu0 0
        %490 = vmatprep.subr.bf16.mxu0 0
        %491 = vmatpush1.bf16.msra.mxu0 0
        %492 = vmatprep.subr.bf16.mxu0 0
        %493 = vmatpush1.bf16.msra.mxu0 0
        %494 = vmatprep.subr.bf16.mxu0 0
        %495 = vmatpush1.bf16.msra.mxu0 0
        %496 = vmatprep.subr.bf16.mxu0 0
        %497 = vmatpush1.bf16.msra.mxu0 0
        %498 = vmatprep.subr.bf16.mxu0 0
        %499 = vmatpush1.bf16.msra.mxu0 0
        %500 = vmatprep.subr.bf16.mxu0 0
        %501 = vmatpush1.bf16.msra.mxu0 0
        %502 = vmatprep.subr.bf16.mxu0 0
        %503 = vmatpush1.bf16.msra.mxu0 %v267
        %504 = vmatprep.subr.bf16.mxu0 0
        %505 = vmatpush2.bf16.msra.mxu0 0
        %506 = vmatprep.subr.bf16.mxu0 0
        %507 = vmatpush2.bf16.msra.mxu0 0
        %508 = vmatprep.subr.bf16.mxu0 0
        %509 = vmatpush2.bf16.msra.mxu0 0
        %510 = vmatprep.subr.bf16.mxu0 0
        %511 = vmatpush2.bf16.msra.mxu0 0
        %512 = vmatprep.subr.bf16.mxu0 0
        %513 = vmatpush2.bf16.msra.mxu0 0
        %514 = vmatprep.subr.bf16.mxu0 0
        %515 = vmatpush2.bf16.msra.mxu0 0
        %516 = vmatprep.subr.bf16.mxu0 0
        %517 = vmatpush2.bf16.msra.mxu0 0
        %518 = vmatprep.subr.bf16.mxu0 0
        %519 = vmatpush2.bf16.msra.mxu0 0
        %520 = vmatprep.mubr.bf16.mxu0 0
        %521 = vmatmul.mubr.bf16.gmra.mxu0 %v281
        %v522 = vpop.f32.mrf.mxu0
        %v523 = vadd.f32 0.0, %v522
        %v524 = vpop.f32.mrf.mxu0
        %v525 = vpop.f32.mrf.mxu0
        %v526 = vadd.f32 0.0, %v525
        %v527 = vpop.f32.mrf.mxu0
        %528 = vdwg.mxu0
        %529 = vmatprep.subr.bf16.mxu0 0
        %530 = vmatpush1.bf16.msra.mxu0 0
        %531 = vmatprep.subr.bf16.mxu0 0
        %532 = vmatpush1.bf16.msra.mxu0 0
        %533 = vmatprep.subr.bf16.mxu0 0
        %534 = vmatpush1.bf16.msra.mxu0 0
        %535 = vmatprep.subr.bf16.mxu0 0
        %536 = vmatpush1.bf16.msra.mxu0 0
        %537 = vmatprep.subr.bf16.mxu0 0
        %538 = vmatpush1.bf16.msra.mxu0 0
        %539 = vmatprep.subr.bf16.mxu0 0
        %540 = vmatpush1.bf16.msra.mxu0 0
        %541 = vmatprep.subr.bf16.mxu0 0
        %542 = vmatpush1.bf16.msra.mxu0 0
        %543 = vmatprep.subr.bf16.mxu0 0
        %544 = vmatpush1.bf16.msra.mxu0 %v268
        %545 = vmatprep.subr.bf16.mxu0 0
        %546 = vmatpush2.bf16.msra.mxu0 0
        %547 = vmatprep.subr.bf16.mxu0 0
        %548 = vmatpush2.bf16.msra.mxu0 0
        %549 = vmatprep.subr.bf16.mxu0 0
        %550 = vmatpush2.bf16.msra.mxu0 0
        %551 = vmatprep.subr.bf16.mxu0 0
        %552 = vmatpush2.bf16.msra.mxu0 0
        %553 = vmatprep.subr.bf16.mxu0 0
        %554 = vmatpush2.bf16.msra.mxu0 0
        %555 = vmatprep.subr.bf16.mxu0 0
        %556 = vmatpush2.bf16.msra.mxu0 0
        %557 = vmatprep.subr.bf16.mxu0 0
        %558 = vmatpush2.bf16.msra.mxu0 0
        %559 = vmatprep.subr.bf16.mxu0 0
        %560 = vmatpush2.bf16.msra.mxu0 0
        %561 = vmatprep.mubr.bf16.mxu0 0
        %562 = vmatmul.mubr.bf16.gmra.mxu0 %v281
        %v563 = vpop.f32.mrf.mxu0
        %v564 = vadd.f32 0.0, %v563
        %v565 = vpop.f32.mrf.mxu0
        %v566 = vpop.f32.mrf.mxu0
        %v567 = vadd.f32 0.0, %v566
        %v568 = vpop.f32.mrf.mxu0
        %569 = vdwg.mxu0
        %570 = vmatprep.subr.bf16.mxu0 0
        %571 = vmatpush1.bf16.msra.mxu0 0
        %572 = vmatprep.subr.bf16.mxu0 0
        %573 = vmatpush1.bf16.msra.mxu0 0
        %574 = vmatprep.subr.bf16.mxu0 0
        %575 = vmatpush1.bf16.msra.mxu0 0
        %576 = vmatprep.subr.bf16.mxu0 0
        %577 = vmatpush1.bf16.msra.mxu0 0
        %578 = vmatprep.subr.bf16.mxu0 0
        %579 = vmatpush1.bf16.msra.mxu0 0
        %580 = vmatprep.subr.bf16.mxu0 0
        %581 = vmatpush1.bf16.msra.mxu0 0
        %582 = vmatprep.subr.bf16.mxu0 0
        %583 = vmatpush1.bf16.msra.mxu0 0
        %584 = vmatprep.subr.bf16.mxu0 0
        %585 = vmatpush1.bf16.msra.mxu0 %v269
        %586 = vmatprep.subr.bf16.mxu0 0
        %587 = vmatpush2.bf16.msra.mxu0 0
        %588 = vmatprep.subr.bf16.mxu0 0
        %589 = vmatpush2.bf16.msra.mxu0 0
        %590 = vmatprep.subr.bf16.mxu0 0
        %591 = vmatpush2.bf16.msra.mxu0 0
        %592 = vmatprep.subr.bf16.mxu0 0
        %593 = vmatpush2.bf16.msra.mxu0 0
        %594 = vmatprep.subr.bf16.mxu0 0
        %595 = vmatpush2.bf16.msra.mxu0 0
        %596 = vmatprep.subr.bf16.mxu0 0
        %597 = vmatpush2.bf16.msra.mxu0 0
        %598 = vmatprep.subr.bf16.mxu0 0
        %599 = vmatpush2.bf16.msra.mxu0 0
        %600 = vmatprep.subr.bf16.mxu0 0
        %601 = vmatpush2.bf16.msra.mxu0 0
        %602 = vmatprep.mubr.bf16.mxu0 0
        %603 = vmatmul.mubr.bf16.gmra.mxu0 %v281
        %v604 = vpop.f32.mrf.mxu0
        %v605 = vadd.f32 0.0, %v604
        %v606 = vpop.f32.mrf.mxu0
        %v607 = vpop.f32.mrf.mxu0
        %v608 = vadd.f32 0.0, %v607
        %v609 = vpop.f32.mrf.mxu0
        %610 = vdwg.mxu0
        %v611 = vpack.c.bf16 %v321, %v318
        %v612 = vpack.c.bf16 %v362, %v359
        %v613 = vpack.c.bf16 %v403, %v400
        %v614 = vpack.c.bf16 %v444, %v441
        %v615 = vpack.c.bf16 %v485, %v482
        %v616 = vpack.c.bf16 %v526, %v523
        %v617 = vpack.c.bf16 %v567, %v564
        %v618 = vpack.c.bf16 %v608, %v605
        %v619 = vld [vmem:[%s3] sm:$0x1]
        %v621 = vlaneseq
        %v622 = vshrl.u32 %v621, 7
        %v623 = vsub.s32 0, %v622
        %v624 = vrot.slane %v619, %v623
        %vm626 = vcmask 261120
        %v628 = vsel %vm626, %v611, 0
        %v631 = vsel %vm626, %v612, 0
        %v634 = vsel %vm626, %v613, 0
        %v637 = vsel %vm626, %v614, 0
        %v640 = vsel %vm626, %v615, 0
        %v643 = vsel %vm626, %v616, 0
        %v646 = vsel %vm626, %v617, 0
        %v649 = vsel %vm626, %v618, 0
        %651 = vmatprep.subr.bf16.mxu0 0
        %652 = vmatpush1.bf16.msra.mxu0 0
        %653 = vmatprep.subr.bf16.mxu0 0
        %654 = vmatpush1.bf16.msra.mxu0 0
        %655 = vmatprep.subr.bf16.mxu0 0
        %656 = vmatpush1.bf16.msra.mxu0 0
        %657 = vmatprep.subr.bf16.mxu0 0
        %658 = vmatpush1.bf16.msra.mxu0 0
        %659 = vmatprep.subr.bf16.mxu0 0
        %660 = vmatpush1.bf16.msra.mxu0 0
        %661 = vmatprep.subr.bf16.mxu0 0
        %662 = vmatpush1.bf16.msra.mxu0 0
        %663 = vmatprep.subr.bf16.mxu0 0
        %664 = vmatpush1.bf16.msra.mxu0 %v278
        %665 = vmatprep.subr.bf16.mxu0 0
        %666 = vmatpush1.bf16.msra.mxu0 %v277
        %667 = vmatprep.subr.bf16.mxu0 0
        %668 = vmatpush2.bf16.msra.mxu0 0
        %669 = vmatprep.subr.bf16.mxu0 0
        %670 = vmatpush2.bf16.msra.mxu0 0
        %671 = vmatprep.subr.bf16.mxu0 0
        %672 = vmatpush2.bf16.msra.mxu0 0
        %673 = vmatprep.subr.bf16.mxu0 0
        %674 = vmatpush2.bf16.msra.mxu0 0
        %675 = vmatprep.subr.bf16.mxu0 0
        %676 = vmatpush2.bf16.msra.mxu0 0
        %677 = vmatprep.subr.bf16.mxu0 0
        %678 = vmatpush2.bf16.msra.mxu0 0
        %679 = vmatprep.subr.bf16.mxu0 0
        %680 = vmatpush2.bf16.msra.mxu0 0
        %681 = vmatprep.subr.bf16.mxu0 0
        %682 = vmatpush2.bf16.msra.mxu0 0
        %683 = vmatprep.mubr.bf16.mxu0 0
        %684 = vmatmul.mubr.bf16.gmra.mxu0 %v628
        %v685 = vpop.f32.mrf.mxu0
        %v686 = vadd.f32 %v624, %v685
        %v687 = vpop.f32.mrf.mxu0
        %v688 = vpop.f32.mrf.mxu0
        %v689 = vadd.f32 %v624, %v688
        %v690 = vpop.f32.mrf.mxu0
        %691 = vmatprep.mubr.bf16.mxu0 0
        %692 = vmatmul.mubr.bf16.gmra.mxu0 %v631
        %v693 = vpop.f32.mrf.mxu0
        %v694 = vadd.f32 %v624, %v693
        %v695 = vpop.f32.mrf.mxu0
        %v696 = vpop.f32.mrf.mxu0
        %v697 = vadd.f32 %v624, %v696
        %v698 = vpop.f32.mrf.mxu0
        %699 = vmatprep.mubr.bf16.mxu0 0
        %700 = vmatmul.mubr.bf16.gmra.mxu0 %v634
        %v701 = vpop.f32.mrf.mxu0
        %v702 = vadd.f32 %v624, %v701
        %v703 = vpop.f32.mrf.mxu0
        %v704 = vpop.f32.mrf.mxu0
        %v705 = vadd.f32 %v624, %v704
        %v706 = vpop.f32.mrf.mxu0
        %707 = vmatprep.mubr.bf16.mxu0 0
        %708 = vmatmul.mubr.bf16.gmra.mxu0 %v637
        %v709 = vpop.f32.mrf.mxu0
        %v710 = vadd.f32 %v624, %v709
        %v711 = vpop.f32.mrf.mxu0
        %v712 = vpop.f32.mrf.mxu0
        %v713 = vadd.f32 %v624, %v712
        %v714 = vpop.f32.mrf.mxu0
        %715 = vmatprep.mubr.bf16.mxu0 0
        %716 = vmatmul.mubr.bf16.gmra.mxu0 %v640
        %v717 = vpop.f32.mrf.mxu0
        %v718 = vadd.f32 %v624, %v717
        %v719 = vpop.f32.mrf.mxu0
        %v720 = vpop.f32.mrf.mxu0
        %v721 = vadd.f32 %v624, %v720
        %v722 = vpop.f32.mrf.mxu0
        %723 = vmatprep.mubr.bf16.mxu0 0
        %724 = vmatmul.mubr.bf16.gmra.mxu0 %v643
        %v725 = vpop.f32.mrf.mxu0
        %v726 = vadd.f32 %v624, %v725
        %v727 = vpop.f32.mrf.mxu0
        %v728 = vpop.f32.mrf.mxu0
        %v729 = vadd.f32 %v624, %v728
        %v730 = vpop.f32.mrf.mxu0
        %731 = vmatprep.mubr.bf16.mxu0 0
        %732 = vmatmul.mubr.bf16.gmra.mxu0 %v646
        %v733 = vpop.f32.mrf.mxu0
        %v734 = vadd.f32 %v624, %v733
        %v735 = vpop.f32.mrf.mxu0
        %v736 = vpop.f32.mrf.mxu0
        %v737 = vadd.f32 %v624, %v736
        %v738 = vpop.f32.mrf.mxu0
        %739 = vmatprep.mubr.bf16.mxu0 0
        %740 = vmatmul.mubr.bf16.gmra.mxu0 %v649
        %v741 = vpop.f32.mrf.mxu0
        %v742 = vadd.f32 %v624, %v741
        %v743 = vpop.f32.mrf.mxu0
        %v744 = vpop.f32.mrf.mxu0
        %v745 = vadd.f32 %v624, %v744
        %v746 = vpop.f32.mrf.mxu0
        %747 = vdwg.mxu0
        %v748 = vmax.f32 %v686, 0.0
        %v749 = vmax.f32 %v689, 0.0
        %v750 = vmax.f32 %v694, 0.0
        %v751 = vmax.f32 %v697, 0.0
        %v752 = vmax.f32 %v702, 0.0
        %v753 = vmax.f32 %v705, 0.0
        %v754 = vmax.f32 %v710, 0.0
        %v755 = vmax.f32 %v713, 0.0
        %v756 = vmax.f32 %v718, 0.0
        %v757 = vmax.f32 %v721, 0.0
        %v758 = vmax.f32 %v726, 0.0
        %v759 = vmax.f32 %v729, 0.0
        %v760 = vmax.f32 %v734, 0.0
        %v761 = vmax.f32 %v737, 0.0
        %v762 = vmax.f32 %v742, 0.0
        %v763 = vmax.f32 %v745, 0.0
        %764 = vst [vmem:[%s244] sm:$0xff] %v748
        %765 = vst [vmem:[%s244 + $0x8] sm:$0xff] %v749
        %766 = vst [vmem:[%s244 + $0x10] sm:$0xff] %v750
        %767 = vst [vmem:[%s244 + $0x18] sm:$0xff] %v751
        %768 = vst [vmem:[%s244 + $0x20] sm:$0xff] %v752
        %769 = vst [vmem:[%s244 + $0x28] sm:$0xff] %v753
        %770 = vst [vmem:[%s244 + $0x30] sm:$0xff] %v754
        %771 = vst [vmem:[%s244 + $0x38] sm:$0xff] %v755
        %772 = vst [vmem:[%s244 + $0x40] sm:$0xff] %v756
        %773 = vst [vmem:[%s244 + $0x48] sm:$0xff] %v757
        %774 = vst [vmem:[%s244 + $0x50] sm:$0xff] %v758
        %775 = vst [vmem:[%s244 + $0x58] sm:$0xff] %v759
        %776 = vst [vmem:[%s244 + $0x60] sm:$0xff] %v760
        %777 = vst [vmem:[%s244 + $0x68] sm:$0xff] %v761
        %778 = vst [vmem:[%s244 + $0x70] sm:$0xff] %v762
        %779 = vst [vmem:[%s244 + $0x78] sm:$0xff] %v763
        %s780 = sand.u32 %s119, 1
        %s781 = scalar_lea.sflag [#allocation4], %s780
        %s782 = sand.u32 %s119, 1
        %s783 = smul.addr %s782, 128
        %s784 = scalar_lea.vmem [#allocation8], %s783
        // Predicated region
        $region49: #{tpu_custom_call.1} parent=35 // pred_check
          %p785 = pneg %p129
        $region50: #{tpu_custom_call.1} parent=35 // pred_check_branch
          %787 = sbr.rel (%p785) target = $region52
        $region51: #{tpu_custom_call.1} parent=35 // pred_region
          %s789 = ssub.s32 2048, 2048
          %790 = vsyncadd %s781, %s789
          %s791 = smul.addr %s22, 16
          %s792 = smul.addr %s791, 128
          %s793 = scalar_lea.hbm %s4, %s792
          %s794 = sshll.u32 %s784, 4
          %s795 = int_to_ptr.vmem [resolvable:$true] %s794
          %800 = dma.vmem_to_hbm [thread:$0]  %s795, 2048, %s793, %s781, 128, 128, 8
        $region52: #{tpu_custom_call.1} parent=35 // pred_fallthru
          _
      $region36: #{tpu_custom_call.1} parent=5 // pred_fallthru
        _
      %p801 = scmp.le.s32.totalorder 2, %s17
      // Predicated region
      $region53: #{tpu_custom_call.1} parent=5 // pred_check
        %p802 = pneg %p801
      $region54: #{tpu_custom_call.1} parent=5 // pred_check_branch
        %804 = sbr.rel (%p802) target = $region56
      $region55: #{tpu_custom_call.1} parent=5 // pred_region
        %s805 = ssub.s32 %s17, 2
        // Predicated region
        $region57: #{tpu_custom_call.1} parent=55 // pred_check
          %p806 = pneg %p135
        $region58: #{tpu_custom_call.1} parent=55 // pred_check_branch
          %808 = sbr.rel (%p806) target = $region60
        $region59: #{tpu_custom_call.1} parent=55 // pred_region
          %s809 = sand.u32 %s120, 1
          %s810 = scalar_lea.sflag [#allocation4], %s809
          %s811 = sand.u32 %s120, 1
          %s812 = smul.addr %s811, 128
          %s813 = scalar_lea.vmem [#allocation8], %s812
          %814 = dma.done %s810, 2048
        $region60: #{tpu_custom_call.1} parent=55 // pred_fallthru
          _
      $region56: #{tpu_custom_call.1} parent=5 // pred_fallthru
        _
    $region6: #{tpu_custom_call.1} parent=1 // loop_footer
      %s21 = sadd.s32 1, %s17
    $region7: #{tpu_custom_call.1} parent=1 // loop_footer_branch
      %16 = sbr.rel target = $region3
    $region8: #{tpu_custom_call.1} parent=1 // loop_exit
      _
    %815 = vsyncpa [#allocation3], 1
    %s816 = scalar_lea.sflag [#allocation3], 1
    %817 = vsyncpa %s816, 1
    %818 = vsyncpa [#allocation6], 1
    %s819 = scalar_lea.sflag [#allocation6], 1
    %820 = vsyncpa %s819, 1
    %821 = vsyncpa [#allocation4], 1
    %s822 = scalar_lea.sflag [#allocation4], 1
    %823 = vsyncpa %s822, 1

</llo_original>
